<compile_context>
chip_gen: v5e
topology: v5e:2x2
jax: 0.10.0
libtpu: 0.0.40
codegen_flags: <defaults>
</compile_context>

<pallas_src>
import functools
import math

import jax
import jax.numpy as jnp
from jax.experimental import pallas as pl
from jax.experimental.pallas import tpu as pltpu


# -----------------------------------------------------------------------------
# LIF parameters (norse LIFParameters defaults)
# -----------------------------------------------------------------------------
LIF_PARAMS = dict(
    tau_syn_inv=1.0 / 5e-3,   # 200.0
    tau_mem_inv=1.0 / 1e-2,   # 100.0
    v_leak=0.0,
    v_th=1.0,
    v_reset=0.0,
)
DT = 0.001


# -----------------------------------------------------------------------------
# Kernel 1: single LIF-MC euler step (3 MXU dots + elementwise), all in VMEM
# -----------------------------------------------------------------------------
def lif_mc_step_kernel(
    x_ref, z_ref, v_ref, i_ref,          # [B, I], [B, H], [B, H], [B, H]
    w_in_t_ref, w_rec_t_ref, g_t_ref,    # [I, H], [H, H], [H, H]
    z_out_ref, v_out_ref, i_out_ref,
    *, dt, tau_syn_inv, tau_mem_inv, v_leak, v_th, v_reset,
):
    x = x_ref[...]
    z = z_ref[...]
    v = v_ref[...]
    i = i_ref[...]

    a_mem = dt * tau_mem_inv
    syn_decay = 1.0 - dt * tau_syn_inv

    # coupling term: v @ g_coupling.T  (g pre-transposed at init, kept f32:
    # this path feeds the spike threshold compare)
    gv = jnp.dot(v, g_t_ref[...], preferred_element_type=jnp.float32)

    # voltage / current dynamics (constants folded)
    v_decayed = v + a_mem * ((v_leak - v) + i + gv)
    i_decayed = syn_decay * i

    # spike (strict '>') and reset as a single select
    spike = (v_decayed - v_th) > 0.0
    z_new = spike.astype(v.dtype)
    v_new = jnp.where(spike, v_reset, v_decayed)

    # input + recurrent projections as two dots (no lane-concat VMEM copy).
    # z is exactly 0/1 so casting it to the recurrent-weight dtype is exact
    # and hits the fast bf16 MXU path when the weight is stored in bf16.
    i_in = jnp.dot(x, w_in_t_ref[...], preferred_element_type=jnp.float32)
    i_rec = jnp.dot(z.astype(w_rec_t_ref.dtype), w_rec_t_ref[...],
                    preferred_element_type=jnp.float32)
    i_new = i_decayed + i_in + i_rec

    z_out_ref[...] = z_new.astype(z_out_ref.dtype)
    v_out_ref[...] = v_new.astype(v_out_ref.dtype)
    i_out_ref[...] = i_new.astype(i_out_ref.dtype)


def _make_step_fn(p, dt):
    kernel = functools.partial(lif_mc_step_kernel, dt=dt, **p)

    def step_impl(x, z, v, i, w_in_t, w_rec_t, g_t):
        B, H = v.shape
        dtype = v.dtype
        vmem = pl.BlockSpec(memory_space=pltpu.MemorySpace.VMEM)
        out_shape = (
            jax.ShapeDtypeStruct((B, H), dtype),  # z_new
            jax.ShapeDtypeStruct((B, H), dtype),  # v_new
            jax.ShapeDtypeStruct((B, H), dtype),  # i_new
        )
        return pl.pallas_call(
            kernel,
            out_shape=out_shape,
            in_specs=[vmem] * 7,
            out_specs=(vmem, vmem, vmem),
            # state buffers are updated in place (inputs are donated at the
            # jit boundary below so the alias actually holds).
            input_output_aliases={1: 0, 2: 1, 3: 2},
        )(x, z, v, i, w_in_t, w_rec_t, g_t)

    return jax.jit(step_impl, donate_argnums=(1, 2, 3))


# -----------------------------------------------------------------------------
# Kernel 2: time-blocked fused recurrence.
#   grid = (batch_tiles, T // T_BLK); each step runs T_BLK euler steps over a
#   resident (T_BLK, B_TILE, H) tile.  Weights are DMA'd once per batch tile
#   and stay in VMEM; (z, v, i) state is carried in VMEM scratch across the
#   "arbitrary" time axis.  The state-independent input projection
#   x @ w_in.T is hoisted out of the serial recurrence into one dense matmul.
# -----------------------------------------------------------------------------
def lif_mc_seq_kernel(
    i_in_ref,                         # [T_BLK, B_TILE, H]  hoisted x @ w_in.T
    z0_ref, v0_ref, i0_ref,           # [B_TILE, H]  initial state (read t==0)
    w_rec_t_ref, g_t_ref,             # [H, H]  resident across the time sweep
    z_seq_ref,                        # [T_BLK, B_TILE, H]  spikes for block t
    v_fin_ref, i_fin_ref,             # [B_TILE, H]  final state (t==last)
    z_sc, v_sc, i_sc,                 # VMEM scratch carrying state across t
    *, t_blk, dt, tau_syn_inv, tau_mem_inv, v_leak, v_th, v_reset,
):
    t = pl.program_id(1)

    @pl.when(t == 0)
    def _init():
        z_sc[...] = z0_ref[...].astype(jnp.float32)
        v_sc[...] = v0_ref[...].astype(jnp.float32)
        i_sc[...] = i0_ref[...].astype(jnp.float32)

    z = z_sc[...]
    v = v_sc[...]
    i = i_sc[...]

    a_mem = dt * tau_mem_inv
    syn_decay = 1.0 - dt * tau_syn_inv

    # Hoist the weight loads out of the unrolled time loop.
    w_rec_t = w_rec_t_ref[...]
    g_t = g_t_ref[...]

    # Fully unrolled T_BLK euler steps (static trip count, tiny live state:
    # three [B_TILE, H] vregs) — gives the LLO scheduler an unrolled loop to
    # overlap the z @ w_rec and v @ g matmuls across steps.
    for t_local in range(t_blk):
        gv = jnp.dot(v, g_t, preferred_element_type=jnp.float32)
        v_decayed = v + a_mem * ((v_leak - v) + i + gv)
        i_decayed = syn_decay * i

        spike = (v_decayed - v_th) > 0.0
        z_new = spike.astype(jnp.float32)
        v_new = jnp.where(spike, v_reset, v_decayed)

        i_rec = jnp.dot(z.astype(w_rec_t_ref.dtype), w_rec_t,
                        preferred_element_type=jnp.float32)
        i_new = i_decayed + i_in_ref[t_local].astype(jnp.float32) + i_rec

        z_seq_ref[t_local] = z_new.astype(z_seq_ref.dtype)
        z, v, i = z_new, v_new, i_new

    z_sc[...] = z
    v_sc[...] = v
    i_sc[...] = i

    @pl.when(t == pl.num_programs(1) - 1)
    def _finalize():
        v_fin_ref[...] = v.astype(v_fin_ref.dtype)
        i_fin_ref[...] = i.astype(i_fin_ref.dtype)


def _make_seq_fn(p, dt, t_blk_pref=8):
    @jax.jit
    def seq(x_seq, z0, v0, i0, w_in_t, w_rec_t, g_t):
        T, B, _ = x_seq.shape
        H = g_t.shape[0]
        dtype = v0.dtype

        # Time block: amortizes per-grid-step overhead; must divide T.
        t_blk = math.gcd(T, t_blk_pref)
        nt = T // t_blk
        # Batch tiles: 2 shards (one per v7x TensorCore) when the (8,128)
        # sublane rule allows it, else a single full-batch tile.
        nb = 2 if (B % 16 == 0) else 1
        b_tile = B // nb

        # Hoisted (state-independent) input projection: one dense matmul at
        # full MXU occupancy, outside the serial recurrence.
        # TODO(synk): optionally store i_in_seq in bf16 to halve this [T,B,H]
        # HBM round-trip (kept f32 to preserve exact reference semantics).
        i_in_seq = jnp.einsum("tbi,ih->tbh", x_seq, w_in_t).astype(dtype)

        kernel = functools.partial(lif_mc_seq_kernel, t_blk=t_blk, dt=dt, **p)

        seq_spec = pl.BlockSpec((t_blk, b_tile, H), lambda b, t: (t, b, 0))
        state_spec = pl.BlockSpec((b_tile, H), lambda b, t: (b, 0))
        # Constant-index weight blocks stay resident in VMEM for the whole
        # time sweep.  (On v7x at very large H: add pipeline_mode=
        # pl.Buffered(1) here to drop their double-buffering.)
        weight_spec = pl.BlockSpec((H, H), lambda b, t: (0, 0))

        out_shape = (
            jax.ShapeDtypeStruct((T, B, H), dtype),  # z over time
            jax.ShapeDtypeStruct((B, H), dtype),     # v final
            jax.ShapeDtypeStruct((B, H), dtype),     # i final
        )
        return pl.pallas_call(
            kernel,
            grid=(nb, nt),
            out_shape=out_shape,
            in_specs=[seq_spec, state_spec, state_spec, state_spec,
                      weight_spec, weight_spec],
            out_specs=(seq_spec, state_spec, state_spec),
            scratch_shapes=[pltpu.VMEM((b_tile, H), jnp.float32)] * 3,
            compiler_params=pltpu.CompilerParams(
                dimension_semantics=("parallel", "arbitrary"),
                vmem_limit_bytes=32 * 1024 * 1024),
        )(i_in_seq, z0, v0, i0, w_rec_t, g_t)

    return seq


# -----------------------------------------------------------------------------
# Module wrapper (deterministic init, PyTorch weight layout kept for reference)
# -----------------------------------------------------------------------------
class LIFMCCellJax:
    """JAX/Pallas equivalent of norse LIFMCCell."""

    def __init__(self, input_size, hidden_size, key, p=LIF_PARAMS, dt=DT,
                 dtype=jnp.float32, rec_weight_dtype=jnp.float32):
        k1, k2, k3 = jax.random.split(key, 3)
        self.input_weights = (
            jax.random.normal(k1, (hidden_size, input_size), dtype)
            / jnp.sqrt(jnp.asarray(input_size, dtype))
        )
        self.recurrent_weights = (
            jax.random.normal(k2, (hidden_size, hidden_size), dtype)
            / jnp.sqrt(jnp.asarray(hidden_size, dtype))
        )
        self.g_coupling = (
            jax.random.normal(k3, (hidden_size, hidden_size), dtype)
            / jnp.sqrt(jnp.asarray(hidden_size, dtype))
        )
        # Pre-transposed once (hot path is weight-transpose free).
        self.w_in_t = self.input_weights.T
        # Recurrent weight in the MXU dtype (bf16 halves its resident VMEM /
        # DMA; z is exactly 0/1 so the dot is exact w.r.t. the rounded weight).
        self.w_rec_t = self.recurrent_weights.T.astype(rec_weight_dtype)
        # g-coupling stays in the state dtype (threshold path).
        self.g_t = self.g_coupling.T
        # Effective recurrent weight actually applied (for references/tests).
        self.recurrent_weights_eff = self.w_rec_t.astype(dtype).T

        self.input_size = input_size
        self.hidden_size = hidden_size
        self.p = dict(p)
        self.dt = dt
        self.dtype = dtype

        self._step = _make_step_fn(self.p, dt)
        self._seq = _make_seq_fn(self.p, dt)

    def init_state(self, batch):
        z0 = jnp.zeros((batch, self.hidden_size), self.dtype)
        v0 = jnp.full((batch, self.hidden_size), self.p["v_leak"], self.dtype)
        i0 = jnp.zeros((batch, self.hidden_size), self.dtype)
        return (z0, v0, i0)

    def __call__(self, input_tensor, state=None):
        """Single euler step — matches LIFMCCell.forward.

        Note: the incoming (z, v, i) buffers are donated / updated in place.
        """
        if state is None:
            state = self.init_state(input_tensor.shape[0])
        z, v, i = state
        z_new, v_new, i_new = self._step(input_tensor, z, v, i,
                                         self.w_in_t, self.w_rec_t, self.g_t)
        return z_new, (z_new, v_new, i_new)

    def run_sequence(self, x_seq, state=None):
        """T fused steps in one pallas_call (x_seq: [T, B, input_size])."""
        if state is None:
            state = self.init_state(x_seq.shape[1])
        z, v, i = state
        z_seq, v_f, i_f = self._seq(x_seq, z, v, i,
                                    self.w_in_t, self.w_rec_t, self.g_t)
        return z_seq, (z_seq[-1], v_f, i_f)


# -----------------------------------------------------------------------------
# Pure-JAX references
# -----------------------------------------------------------------------------
def lif_mc_step_ref(x, state, w_in, w_rec, g, p=LIF_PARAMS, dt=DT):
    z, v, i = state
    dv = dt * p["tau_mem_inv"] * ((p["v_leak"] - v) + i + v @ g.T)
    v_decayed = v + dv
    i_decayed = i - dt * p["tau_syn_inv"] * i
    z_new = (v_decayed - p["v_th"] > 0.0).astype(v.dtype)
    v_new = (1.0 - z_new) * v_decayed + z_new * p["v_reset"]
    i_new = i_decayed + x @ w_in.T + z @ w_rec.T
    return z_new, (z_new, v_new, i_new)


def lif_mc_sequence_ref(x_seq, state, w_in, w_rec, g, p=LIF_PARAMS, dt=DT):
    def body(carry, x_t):
        _, new_state = lif_mc_step_ref(x_t, carry, w_in, w_rec, g, p, dt)
        return new_state, new_state[0]
    final_state, z_seq = jax.lax.scan(body, state, x_seq)
    return z_seq, final_state


# -----------------------------------------------------------------------------
# Demo / correctness check
# -----------------------------------------------------------------------------
if __name__ == "__main__":
    key = jax.random.PRNGKey(0)
    keys = jax.random.split(key, 10)
    k_param, k_x, k_v, k_i, k_z, k_seq = keys[:6]
    k_v2, k_i2, k_z2, k_seq2 = keys[6:]

    B, INPUT, HIDDEN, T = 8, 128, 128, 16
    cell = LIFMCCellJax(INPUT, HIDDEN, k_param)          # exact f32 path

    x = jax.random.normal(k_x, (B, INPUT), jnp.float32)
    # non-trivial state so the spike / reset path is exercised
    v0 = 1.5 * jax.random.normal(k_v, (B, HIDDEN), jnp.float32)
    i0 = jax.random.normal(k_i, (B, HIDDEN), jnp.float32)
    z0 = (jax.random.uniform(k_z, (B, HIDDEN)) > 0.5).astype(jnp.float32)
    state0 = (z0, v0, i0)

    # ---- single step (module forward); pass a copy because the state
    #      buffers are donated / updated in place ----
    state_step = tuple(jnp.copy(s) for s in state0)
    z_out, (z_new, v_new, i_new) = cell(x, state_step)
    jax.block_until_ready((z_out, v_new, i_new))

    z_ref, (zr, vr, ir) = lif_mc_step_ref(
        x, state0, cell.input_weights, cell.recurrent_weights_eff,
        cell.g_coupling)
    assert jnp.allclose(z_out, z_ref, atol=1e-5), "step: spike mismatch"
    assert jnp.allclose(v_new, vr, atol=1e-4), "step: voltage mismatch"
    assert jnp.allclose(i_new, ir, atol=1e-4), "step: current mismatch"

    # default-state path (state=None) like the torch module
    z_def, _ = cell(x, None)
    jax.block_until_ready(z_def)

    # ---- fused, time-blocked sequence kernel ----
    x_seq = jax.random.normal(k_seq, (T, B, INPUT), jnp.float32)
    z_seq, (z_f, v_f, i_f) = cell.run_sequence(x_seq, state0)
    jax.block_until_ready((z_seq, z_f, v_f, i_f))

    z_seq_ref, (zfr, vfr, ifr) = lif_mc_sequence_ref(
        x_seq, state0, cell.input_weights, cell.recurrent_weights_eff,
        cell.g_coupling)
    assert jnp.allclose(z_seq, z_seq_ref, atol=1e-5), "seq: spike mismatch"
    assert jnp.allclose(z_f, zfr, atol=1e-5), "seq: final spike mismatch"
    assert jnp.allclose(v_f, vfr, atol=1e-4), "seq: final voltage mismatch"
    assert jnp.allclose(i_f, ifr, atol=1e-4), "seq: final current mismatch"

    # ---- larger batch: exercises the 2-way "parallel" batch-tile grid axis
    #      (megacore path); spike trains compared with a robust agreement
    #      check since near-threshold samples may flip at f32 noise level ----
    B2 = 16
    v0b = 1.5 * jax.random.normal(k_v2, (B2, HIDDEN), jnp.float32)
    i0b = jax.random.normal(k_i2, (B2, HIDDEN), jnp.float32)
    z0b = (jax.random.uniform(k_z2, (B2, HIDDEN)) > 0.5).astype(jnp.float32)
    x_seq2 = jax.random.normal(k_seq2, (T, B2, INPUT), jnp.float32)
    z_seq2, (z_f2, v_f2, i_f2) = cell.run_sequence(x_seq2, (z0b, v0b, i0b))
    jax.block_until_ready((z_seq2, v_f2, i_f2))
    z_seq2_ref, _ = lif_mc_sequence_ref(
        x_seq2, (z0b, v0b, i0b), cell.input_weights,
        cell.recurrent_weights_eff, cell.g_coupling)
    agree = float(jnp.mean((z_seq2 == z_seq2_ref).astype(jnp.float32)))
    assert agree > 0.995, f"seq (batch-tiled): spike agreement {agree}"
    assert bool(jnp.all(jnp.isfinite(v_f2))) and bool(jnp.all(jnp.isfinite(i_f2)))

    # ---- bf16 recurrent-weight fast path (halved resident weight / DMA) ----
    cell_bf = LIFMCCellJax(INPUT, HIDDEN, k_param,
                           rec_weight_dtype=jnp.bfloat16)
    z_seq_bf, (_, v_bf, i_bf) = cell_bf.run_sequence(x_seq, state0)
    jax.block_until_ready((z_seq_bf, v_bf, i_bf))
    z_seq_bf_ref, _ = lif_mc_sequence_ref(
        x_seq, state0, cell_bf.input_weights, cell_bf.recurrent_weights_eff,
        cell_bf.g_coupling)
    assert bool(jnp.all(jnp.isfinite(v_bf))) and bool(jnp.all(jnp.isfinite(i_bf)))
    agree_bf = float(jnp.mean((z_seq_bf == z_seq_bf_ref).astype(jnp.float32)))
    assert agree_bf > 0.995, f"seq (bf16 w_rec): spike agreement {agree_bf}"

    print("KERNEL_OK")
</pallas_src>

<mosaic_0001>
module attributes {stable_mosaic.version = 11 : i64} {
  func.func @lif_mc_step_kernel(%arg0: memref<8x128xf32, #tpu.memory_space<vmem>>, %arg1: memref<8x128xf32, #tpu.memory_space<vmem>>, %arg2: memref<8x128xf32, #tpu.memory_space<vmem>>, %arg3: memref<8x128xf32, #tpu.memory_space<vmem>>, %arg4: memref<128x128xf32, #tpu.memory_space<vmem>>, %arg5: memref<128x128xf32, #tpu.memory_space<vmem>>, %arg6: memref<128x128xf32, #tpu.memory_space<vmem>>, %arg7: memref<8x128xf32, #tpu.memory_space<vmem>>, %arg8: memref<8x128xf32, #tpu.memory_space<vmem>>, %arg9: memref<8x128xf32, #tpu.memory_space<vmem>>) attributes {dimension_semantics = [], scalar_prefetch = 0 : i64, scratch_operands = 0 : i64, tpu.core_type = #tpu.core_type<tc>} {
    %c0 = arith.constant 0 : index
    %c0_0 = arith.constant 0 : index
    %0 = vector.load %arg0[%c0, %c0_0] : memref<8x128xf32, #tpu.memory_space<vmem>>, vector<8x128xf32>
    %c0_1 = arith.constant 0 : index
    %c0_2 = arith.constant 0 : index
    %1 = vector.load %arg1[%c0_1, %c0_2] : memref<8x128xf32, #tpu.memory_space<vmem>>, vector<8x128xf32>
    %c0_3 = arith.constant 0 : index
    %c0_4 = arith.constant 0 : index
    %2 = vector.load %arg2[%c0_3, %c0_4] : memref<8x128xf32, #tpu.memory_space<vmem>>, vector<8x128xf32>
    %c0_5 = arith.constant 0 : index
    %c0_6 = arith.constant 0 : index
    %3 = vector.load %arg3[%c0_5, %c0_6] : memref<8x128xf32, #tpu.memory_space<vmem>>, vector<8x128xf32>
    %c0_7 = arith.constant 0 : index
    %c0_8 = arith.constant 0 : index
    %4 = vector.load %arg6[%c0_7, %c0_8] : memref<128x128xf32, #tpu.memory_space<vmem>>, vector<128x128xf32>
    %cst = arith.constant dense<0.000000e+00> : vector<8x128xf32>
    %5 = tpu.matmul %2, %4, %cst {dimension_numbers = #tpu.dot_dimension_numbers<[1], [0], [0], [1], [0, 0, 1, 1], [], []>} : vector<8x128xf32>, vector<128x128xf32>, vector<8x128xf32> -> vector<8x128xf32>
    %cst_9 = arith.constant 0.000000e+00 : f32
    %6 = vector.broadcast %cst_9 : f32 to vector<8x128xf32>
    %7 = arith.subf %6, %2 : vector<8x128xf32>
    %8 = arith.addf %7, %3 : vector<8x128xf32>
    %9 = arith.addf %8, %5 : vector<8x128xf32>
    %cst_10 = arith.constant 1.000000e-01 : f32
    %10 = vector.broadcast %cst_10 : f32 to vector<8x128xf32>
    %11 = arith.mulf %10, %9 : vector<8x128xf32>
    %12 = arith.addf %2, %11 : vector<8x128xf32>
    %cst_11 = arith.constant 8.000000e-01 : f32
    %13 = vector.broadcast %cst_11 : f32 to vector<8x128xf32>
    %14 = arith.mulf %13, %3 : vector<8x128xf32>
    %cst_12 = arith.constant 1.000000e+00 : f32
    %15 = vector.broadcast %cst_12 : f32 to vector<8x128xf32>
    %16 = arith.subf %12, %15 : vector<8x128xf32>
    %cst_13 = arith.constant 0.000000e+00 : f32
    %17 = vector.broadcast %cst_13 : f32 to vector<8x128xf32>
    %18 = arith.cmpf ogt, %16, %17 : vector<8x128xf32>
    %19 = arith.extui %18 : vector<8x128xi1> to vector<8x128xi32>
    %20 = arith.sitofp %19 : vector<8x128xi32> to vector<8x128xf32>
    %cst_14 = arith.constant 0.000000e+00 : f32
    %21 = vector.broadcast %cst_14 : f32 to vector<8x128xf32>
    %22 = arith.select %18, %21, %12 : vector<8x128xi1>, vector<8x128xf32>
    %c0_15 = arith.constant 0 : index
    %c0_16 = arith.constant 0 : index
    %23 = vector.load %arg4[%c0_15, %c0_16] : memref<128x128xf32, #tpu.memory_space<vmem>>, vector<128x128xf32>
    %cst_17 = arith.constant dense<0.000000e+00> : vector<8x128xf32>
    %24 = tpu.matmul %0, %23, %cst_17 {dimension_numbers = #tpu.dot_dimension_numbers<[1], [0], [0], [1], [0, 0, 1, 1], [], []>} : vector<8x128xf32>, vector<128x128xf32>, vector<8x128xf32> -> vector<8x128xf32>
    %c0_18 = arith.constant 0 : index
    %c0_19 = arith.constant 0 : index
    %25 = vector.load %arg5[%c0_18, %c0_19] : memref<128x128xf32, #tpu.memory_space<vmem>>, vector<128x128xf32>
    %cst_20 = arith.constant dense<0.000000e+00> : vector<8x128xf32>
    %26 = tpu.matmul %1, %25, %cst_20 {dimension_numbers = #tpu.dot_dimension_numbers<[1], [0], [0], [1], [0, 0, 1, 1], [], []>} : vector<8x128xf32>, vector<128x128xf32>, vector<8x128xf32> -> vector<8x128xf32>
    %27 = arith.addf %14, %24 : vector<8x128xf32>
    %28 = arith.addf %27, %26 : vector<8x128xf32>
    %c0_21 = arith.constant 0 : index
    %c0_22 = arith.constant 0 : index
    %29 = vector.load %arg7[%c0_21, %c0_22] : memref<8x128xf32, #tpu.memory_space<vmem>>, vector<8x128xf32>
    tpu.vector_store %arg7[%c0_21, %c0_22], %20 {strides = array<i32>} : memref<8x128xf32, #tpu.memory_space<vmem>>, vector<8x128xf32>,
    %c0_23 = arith.constant 0 : index
    %c0_24 = arith.constant 0 : index
    %30 = vector.load %arg8[%c0_23, %c0_24] : memref<8x128xf32, #tpu.memory_space<vmem>>, vector<8x128xf32>
    tpu.vector_store %arg8[%c0_23, %c0_24], %22 {strides = array<i32>} : memref<8x128xf32, #tpu.memory_space<vmem>>, vector<8x128xf32>,
    %c0_25 = arith.constant 0 : index
    %c0_26 = arith.constant 0 : index
    %31 = vector.load %arg9[%c0_25, %c0_26] : memref<8x128xf32, #tpu.memory_space<vmem>>, vector<8x128xf32>
    tpu.vector_store %arg9[%c0_25, %c0_26], %28 {strides = array<i32>} : memref<8x128xf32, #tpu.memory_space<vmem>>, vector<8x128xf32>,
    return
  }
}

</mosaic_0001>

<llo_original>
// kernel: step_impl.1
$region0: #{step_impl.1}
  #allocation0 [shape = 'u32[]', space=smem, size = 0x4, offset = 0x4, fixed_abs, tag = 'smem constant byte address 0x4 - core index']
  #allocation1 [shape = 'u32[72,128]{1,0:T(1,128)}', space=vmem, size = 0x9000, scoped, tag = 'internal scratch']
  %s0 = inlined_call_operand.hbm [shape: f32[8,128], index: 0, kind: input, shape index: {}]
  %s1 = inlined_call_operand.hbm [shape: f32[8,128], index: 1, kind: input, shape index: {}, may-alias: {1,7}]
  %s2 = inlined_call_operand.hbm [shape: f32[8,128], index: 2, kind: input, shape index: {}, may-alias: {2,8}]
  %s3 = inlined_call_operand.hbm [shape: f32[8,128], index: 3, kind: input, shape index: {}, may-alias: {3,9}]
  %s4 = inlined_call_operand.hbm [shape: f32[128,128], index: 4, kind: input, shape index: {}]
  %s5 = inlined_call_operand.hbm [shape: f32[128,128], index: 5, kind: input, shape index: {}]
  %s6 = inlined_call_operand.hbm [shape: f32[128,128], index: 6, kind: input, shape index: {}]
  %s7 = inlined_call_operand.hbm [shape: f32[8,128], index: 7, kind: output, shape index: {0}, may-alias: {1,7}]
  %s8 = inlined_call_operand.hbm [shape: f32[8,128], index: 8, kind: output, shape index: {1}, may-alias: {2,8}]
  %s9 = inlined_call_operand.hbm [shape: f32[8,128], index: 9, kind: output, shape index: {2}, may-alias: {3,9}]
  %10 = xla_tuple %s7, %s8, %s9
  %s11 = sld [smem:[#allocation0]]
  $region82: #{step_impl.1} parent=0
    _
  %s13 = ssub.s32 1, %s11
  %s14 = scalar_select 0, %s13, %s11
  $region1: #{step_impl.1} parent=0
    #allocation2 [shape = 'u8[4096]{0}', space=vmem, size = 0x1000, scoped, tag = 'input window, operand 0, single buffered']
    #allocation3 [shape = 's32[1]{0}', space=sflag, size = 0x4, scoped, tag = 'scoped memory for step_impl.1']
    #allocation4 [shape = 's32[1]{0}', space=sflag, size = 0x4, scoped, tag = 'scoped memory for step_impl.1']
    #allocation5 [shape = 'u8[4096]{0}', space=vmem, size = 0x1000, scoped, tag = 'input window, operand 1, single buffered']
    #allocation6 [shape = 's32[1]{0}', space=sflag, size = 0x4, scoped, tag = 'scoped memory for step_impl.1']
    #allocation7 [shape = 'u8[4096]{0}', space=vmem, size = 0x1000, scoped, tag = 'input window, operand 2, single buffered']
    #allocation8 [shape = 'u8[4096]{0}', space=vmem, size = 0x1000, scoped, tag = 'input window, operand 3, single buffered']
    #allocation9 [shape = 's32[1]{0}', space=sflag, size = 0x4, scoped, tag = 'scoped memory for step_impl.1']
    #allocation10 [shape = 'u8[65536]{0}', space=vmem, size = 0x10000, scoped, tag = 'input window, operand 4, single buffered']
    #allocation11 [shape = 'u8[65536]{0}', space=vmem, size = 0x10000, scoped, tag = 'input window, operand 5, single buffered']
    #allocation12 [shape = 's32[1]{0}', space=sflag, size = 0x4, scoped, tag = 'scoped memory for step_impl.1']
    #allocation13 [shape = 'u8[65536]{0}', space=vmem, size = 0x10000, scoped, tag = 'input window, operand 6, single buffered']
    #allocation14 [shape = 'u8[4096]{0}', space=vmem, size = 0x1000, scoped, tag = 'output window, operand 0, single buffered']
    #allocation15 [shape = 'u8[4096]{0}', space=vmem, size = 0x1000, scoped, tag = 'output window, operand 1, single buffered']
    #allocation16 [shape = 's32[1]{0}', space=sflag, size = 0x4, scoped, tag = 'scoped memory for step_impl.1']
    #allocation17 [shape = 'u8[4096]{0}', space=vmem, size = 0x1000, scoped, tag = 'output window, operand 2, single buffered']
    %15 = vsyncpa [#allocation3], 0
    %16 = vsyncpa [#allocation6], 0
    %17 = vsyncpa [#allocation9], 0
    %18 = vsyncpa [#allocation12], 0
    %19 = vsyncpa [#allocation4], 0
    %20 = vsyncpa [#allocation16], 0
    // Predicated region
    $region2: #{step_impl.1} parent=1 // pred_check
      _
    $region3: #{step_impl.1} parent=1 // pred_check_branch
      %22 = sbr.rel (0) target = $region5
    $region4: #{step_impl.1} parent=1 // pred_region
      %24 = vsyncadd [#allocation3], 0
      %s26 = sshll.u32 %s0, 4
      %s27 = int_to_ptr.hbm [resolvable:$true] %s26
      %s28 = sshll.u32 [#allocation2], 4
      %s29 = int_to_ptr.vmem [resolvable:$true] %s28
      %31 = dma.hbm_to_vmem [thread:$0]  %s27, 128, %s29, [#allocation3]
    $region5: #{step_impl.1} parent=1 // pred_fallthru
      _
    // Predicated region
    $region6: #{step_impl.1} parent=1 // pred_check
      _
    $region7: #{step_impl.1} parent=1 // pred_check_branch
      %33 = sbr.rel (0) target = $region9
    $region8: #{step_impl.1} parent=1 // pred_region
      %35 = vsyncadd [#allocation6], 0
      %s37 = sshll.u32 %s1, 4
      %s38 = int_to_ptr.hbm [resolvable:$true] %s37
      %s39 = sshll.u32 [#allocation5], 4
      %s40 = int_to_ptr.vmem [resolvable:$true] %s39
      %42 = dma.hbm_to_vmem [thread:$0]  %s38, 128, %s40, [#allocation6]
    $region9: #{step_impl.1} parent=1 // pred_fallthru
      _
    // Predicated region
    $region10: #{step_impl.1} parent=1 // pred_check
      _
    $region11: #{step_impl.1} parent=1 // pred_check_branch
      %44 = sbr.rel (0) target = $region13
    $region12: #{step_impl.1} parent=1 // pred_region
      %46 = vsyncadd [#allocation6], 0
      %s48 = sshll.u32 %s2, 4
      %s49 = int_to_ptr.hbm [resolvable:$true] %s48
      %s50 = sshll.u32 [#allocation7], 4
      %s51 = int_to_ptr.vmem [resolvable:$true] %s50
      %53 = dma.hbm_to_vmem [thread:$0]  %s49, 128, %s51, [#allocation6]
    $region13: #{step_impl.1} parent=1 // pred_fallthru
      _
    // Predicated region
    $region14: #{step_impl.1} parent=1 // pred_check
      _
    $region15: #{step_impl.1} parent=1 // pred_check_branch
      %55 = sbr.rel (0) target = $region17
    $region16: #{step_impl.1} parent=1 // pred_region
      %57 = vsyncadd [#allocation9], 0
      %s59 = sshll.u32 %s3, 4
      %s60 = int_to_ptr.hbm [resolvable:$true] %s59
      %s61 = sshll.u32 [#allocation8], 4
      %s62 = int_to_ptr.vmem [resolvable:$true] %s61
      %64 = dma.hbm_to_vmem [thread:$0]  %s60, 128, %s62, [#allocation9]
    $region17: #{step_impl.1} parent=1 // pred_fallthru
      _
    // Predicated region
    $region18: #{step_impl.1} parent=1 // pred_check
      _
    $region19: #{step_impl.1} parent=1 // pred_check_branch
      %66 = sbr.rel (0) target = $region21
    $region20: #{step_impl.1} parent=1 // pred_region
      %68 = vsyncadd [#allocation9], 0
      %s69 = sshll.u32 %s4, 4
      %s70 = int_to_ptr.hbm [resolvable:$true] %s69
      %s71 = sshll.u32 [#allocation10], 4
      %s72 = int_to_ptr.vmem [resolvable:$true] %s71
      %77 = dma.hbm_to_vmem [thread:$0]  %s70, 2048, %s72, [#allocation9], 128, 128, 8
    $region21: #{step_impl.1} parent=1 // pred_fallthru
      _
    // Predicated region
    $region22: #{step_impl.1} parent=1 // pred_check
      _
    $region23: #{step_impl.1} parent=1 // pred_check_branch
      %79 = sbr.rel (0) target = $region25
    $region24: #{step_impl.1} parent=1 // pred_region
      %81 = vsyncadd [#allocation12], 0
      %s82 = sshll.u32 %s5, 4
      %s83 = int_to_ptr.hbm [resolvable:$true] %s82
      %s84 = sshll.u32 [#allocation11], 4
      %s85 = int_to_ptr.vmem [resolvable:$true] %s84
      %90 = dma.hbm_to_vmem [thread:$0]  %s83, 2048, %s85, [#allocation12], 128, 128, 8
    $region25: #{step_impl.1} parent=1 // pred_fallthru
      _
    // Predicated region
    $region26: #{step_impl.1} parent=1 // pred_check
      _
    $region27: #{step_impl.1} parent=1 // pred_check_branch
      %92 = sbr.rel (0) target = $region29
    $region28: #{step_impl.1} parent=1 // pred_region
      %94 = vsyncadd [#allocation12], 0
      %s95 = sshll.u32 %s6, 4
      %s96 = int_to_ptr.hbm [resolvable:$true] %s95
      %s97 = sshll.u32 [#allocation13], 4
      %s98 = int_to_ptr.vmem [resolvable:$true] %s97
      %103 = dma.hbm_to_vmem [thread:$0]  %s96, 2048, %s98, [#allocation12], 128, 128, 8
    $region29: #{step_impl.1} parent=1 // pred_fallthru
      _
    // Predicated region
    $region30: #{step_impl.1} parent=1 // pred_check
      _
    $region31: #{step_impl.1} parent=1 // pred_check_branch
      %105 = sbr.rel (0) target = $region33
    $region32: #{step_impl.1} parent=1 // pred_region
      %107 = dma.done [#allocation3], 128
    $region33: #{step_impl.1} parent=1 // pred_fallthru
      _
    // Predicated region
    $region34: #{step_impl.1} parent=1 // pred_check
      _
    $region35: #{step_impl.1} parent=1 // pred_check_branch
      %109 = sbr.rel (0) target = $region37
    $region36: #{step_impl.1} parent=1 // pred_region
      %111 = dma.done [#allocation6], 128
    $region37: #{step_impl.1} parent=1 // pred_fallthru
      _
    // Predicated region
    $region38: #{step_impl.1} parent=1 // pred_check
      _
    $region39: #{step_impl.1} parent=1 // pred_check_branch
      %113 = sbr.rel (0) target = $region41
    $region40: #{step_impl.1} parent=1 // pred_region
      %115 = dma.done [#allocation6], 128
    $region41: #{step_impl.1} parent=1 // pred_fallthru
      _
    // Predicated region
    $region42: #{step_impl.1} parent=1 // pred_check
      _
    $region43: #{step_impl.1} parent=1 // pred_check_branch
      %117 = sbr.rel (0) target = $region45
    $region44: #{step_impl.1} parent=1 // pred_region
      %119 = dma.done [#allocation9], 128
    $region45: #{step_impl.1} parent=1 // pred_fallthru
      _
    // Predicated region
    $region46: #{step_impl.1} parent=1 // pred_check
      _
    $region47: #{step_impl.1} parent=1 // pred_check_branch
      %121 = sbr.rel (0) target = $region49
    $region48: #{step_impl.1} parent=1 // pred_region
      %123 = dma.done [#allocation9], 2048
    $region49: #{step_impl.1} parent=1 // pred_fallthru
      _
    // Predicated region
    $region50: #{step_impl.1} parent=1 // pred_check
      _
    $region51: #{step_impl.1} parent=1 // pred_check_branch
      %125 = sbr.rel (0) target = $region53
    $region52: #{step_impl.1} parent=1 // pred_region
      %127 = dma.done [#allocation12], 2048
    $region53: #{step_impl.1} parent=1 // pred_fallthru
      _
    // Predicated region
    $region54: #{step_impl.1} parent=1 // pred_check
      _
    $region55: #{step_impl.1} parent=1 // pred_check_branch
      %129 = sbr.rel (0) target = $region57
    $region56: #{step_impl.1} parent=1 // pred_region
      %131 = dma.done [#allocation12], 2048
    $region57: #{step_impl.1} parent=1 // pred_fallthru
      _
    %v132 = vld [vmem:[#allocation2] sm:$0xff]
    %v133 = vld [vmem:[#allocation5] sm:$0xff]
    %v134 = vld [vmem:[#allocation7] sm:$0xff]
    %v135 = vld [vmem:[#allocation8] sm:$0xff]
    %v136 = vld [vmem:[#allocation13] sm:$0xff]
    %v137 = vld [vmem:[#allocation13 + $0x8] sm:$0xff]
    %v138 = vld [vmem:[#allocation13 + $0x10] sm:$0xff]
    %v139 = vld [vmem:[#allocation13 + $0x18] sm:$0xff]
    %v140 = vld [vmem:[#allocation13 + $0x20] sm:$0xff]
    %v141 = vld [vmem:[#allocation13 + $0x28] sm:$0xff]
    %v142 = vld [vmem:[#allocation13 + $0x30] sm:$0xff]
    %v143 = vld [vmem:[#allocation13 + $0x38] sm:$0xff]
    %v144 = vld [vmem:[#allocation13 + $0x40] sm:$0xff]
    %v145 = vld [vmem:[#allocation13 + $0x48] sm:$0xff]
    %v146 = vld [vmem:[#allocation13 + $0x50] sm:$0xff]
    %v147 = vld [vmem:[#allocation13 + $0x58] sm:$0xff]
    %v148 = vld [vmem:[#allocation13 + $0x60] sm:$0xff]
    %v149 = vld [vmem:[#allocation13 + $0x68] sm:$0xff]
    %v150 = vld [vmem:[#allocation13 + $0x70] sm:$0xff]
    %v151 = vld [vmem:[#allocation13 + $0x78] sm:$0xff]
    %152 = vmatpush.msra.mxu0 %v151
    %153 = vmatpush.msra.mxu0 %v150
    %154 = vmatpush.msra.mxu0 %v149
    %155 = vmatpush.msra.mxu0 %v148
    %156 = vmatpush.msra.mxu0 %v147
    %157 = vmatpush.msra.mxu0 %v146
    %158 = vmatpush.msra.mxu0 %v145
    %159 = vmatpush.msra.mxu0 %v144
    %160 = vmatpush.msra.mxu0 %v143
    %161 = vmatpush.msra.mxu0 %v142
    %162 = vmatpush.msra.mxu0 %v141
    %163 = vmatpush.msra.mxu0 %v140
    %164 = vmatpush.msra.mxu0 %v139
    %165 = vmatpush.msra.mxu0 %v138
    %166 = vmatpush.msra.mxu0 %v137
    %167 = vmatpush.msra.mxu0 %v136
    %168 = vmatmul.f32.gmra.mxu0 %v134
    %v169 = vpop.f32.mrf.mxu0
    %v170 = vadd.f32 0.0, %v169
    %171 = vdwg.mxu0
    %v172 = vsub.f32 0.0, %v134
    %v173 = vadd.f32 %v172, %v135
    %v174 = vadd.f32 %v173, %v170
    %v175 = vmul.f32 %v174, 0.1
    %v176 = vadd.f32 %v134, %v175
    %v177 = vmul.f32 %v135, 0.8
    %v178 = vsub.f32 %v176, 1.0
    %vm179 = vcmp.gt.f32.partialorder %v178, 0.0
    %v180 = vsel %vm179, 1, 0
    %v181 = vcvt.s32.f32 %v180
    %v182 = vsel %vm179, 0.0, %v176
    %v183 = vld [vmem:[#allocation10] sm:$0xff]
    %v184 = vld [vmem:[#allocation10 + $0x8] sm:$0xff]
    %v185 = vld [vmem:[#allocation10 + $0x10] sm:$0xff]
    %v186 = vld [vmem:[#allocation10 + $0x18] sm:$0xff]
    %v187 = vld [vmem:[#allocation10 + $0x20] sm:$0xff]
    %v188 = vld [vmem:[#allocation10 + $0x28] sm:$0xff]
    %v189 = vld [vmem:[#allocation10 + $0x30] sm:$0xff]
    %v190 = vld [vmem:[#allocation10 + $0x38] sm:$0xff]
    %v191 = vld [vmem:[#allocation10 + $0x40] sm:$0xff]
    %v192 = vld [vmem:[#allocation10 + $0x48] sm:$0xff]
    %v193 = vld [vmem:[#allocation10 + $0x50] sm:$0xff]
    %v194 = vld [vmem:[#allocation10 + $0x58] sm:$0xff]
    %v195 = vld [vmem:[#allocation10 + $0x60] sm:$0xff]
    %v196 = vld [vmem:[#allocation10 + $0x68] sm:$0xff]
    %v197 = vld [vmem:[#allocation10 + $0x70] sm:$0xff]
    %v198 = vld [vmem:[#allocation10 + $0x78] sm:$0xff]
    %199 = vmatpush.msra.mxu0 %v198
    %200 = vmatpush.msra.mxu0 %v197
    %201 = vmatpush.msra.mxu0 %v196
    %202 = vmatpush.msra.mxu0 %v195
    %203 = vmatpush.msra.mxu0 %v194
    %204 = vmatpush.msra.mxu0 %v193
    %205 = vmatpush.msra.mxu0 %v192
    %206 = vmatpush.msra.mxu0 %v191
    %207 = vmatpush.msra.mxu0 %v190
    %208 = vmatpush.msra.mxu0 %v189
    %209 = vmatpush.msra.mxu0 %v188
    %210 = vmatpush.msra.mxu0 %v187
    %211 = vmatpush.msra.mxu0 %v186
    %212 = vmatpush.msra.mxu0 %v185
    %213 = vmatpush.msra.mxu0 %v184
    %214 = vmatpush.msra.mxu0 %v183
    %215 = vmatmul.f32.gmra.mxu0 %v132
    %v216 = vpop.f32.mrf.mxu0
    %v217 = vadd.f32 0.0, %v216
    %218 = vdwg.mxu0
    %v219 = vld [vmem:[#allocation11] sm:$0xff]
    %v220 = vld [vmem:[#allocation11 + $0x8] sm:$0xff]
    %v221 = vld [vmem:[#allocation11 + $0x10] sm:$0xff]
    %v222 = vld [vmem:[#allocation11 + $0x18] sm:$0xff]
    %v223 = vld [vmem:[#allocation11 + $0x20] sm:$0xff]
    %v224 = vld [vmem:[#allocation11 + $0x28] sm:$0xff]
    %v225 = vld [vmem:[#allocation11 + $0x30] sm:$0xff]
    %v226 = vld [vmem:[#allocation11 + $0x38] sm:$0xff]
    %v227 = vld [vmem:[#allocation11 + $0x40] sm:$0xff]
    %v228 = vld [vmem:[#allocation11 + $0x48] sm:$0xff]
    %v229 = vld [vmem:[#allocation11 + $0x50] sm:$0xff]
    %v230 = vld [vmem:[#allocation11 + $0x58] sm:$0xff]
    %v231 = vld [vmem:[#allocation11 + $0x60] sm:$0xff]
    %v232 = vld [vmem:[#allocation11 + $0x68] sm:$0xff]
    %v233 = vld [vmem:[#allocation11 + $0x70] sm:$0xff]
    %v234 = vld [vmem:[#allocation11 + $0x78] sm:$0xff]
    %235 = vmatpush.msra.mxu0 %v234
    %236 = vmatpush.msra.mxu0 %v233
    %237 = vmatpush.msra.mxu0 %v232
    %238 = vmatpush.msra.mxu0 %v231
    %239 = vmatpush.msra.mxu0 %v230
    %240 = vmatpush.msra.mxu0 %v229
    %241 = vmatpush.msra.mxu0 %v228
    %242 = vmatpush.msra.mxu0 %v227
    %243 = vmatpush.msra.mxu0 %v226
    %244 = vmatpush.msra.mxu0 %v225
    %245 = vmatpush.msra.mxu0 %v224
    %246 = vmatpush.msra.mxu0 %v223
    %247 = vmatpush.msra.mxu0 %v222
    %248 = vmatpush.msra.mxu0 %v221
    %249 = vmatpush.msra.mxu0 %v220
    %250 = vmatpush.msra.mxu0 %v219
    %251 = vmatmul.f32.gmra.mxu0 %v133
    %v252 = vpop.f32.mrf.mxu0
    %v253 = vadd.f32 0.0, %v252
    %254 = vdwg.mxu0
    %v255 = vadd.f32 %v177, %v217
    %v256 = vadd.f32 %v255, %v253
    %257 = vst [vmem:[#allocation14] sm:$0xff] %v181
    %258 = vst [vmem:[#allocation15] sm:$0xff] %v182
    %259 = vst [vmem:[#allocation17] sm:$0xff] %v256
    // Predicated region
    $region58: #{step_impl.1} parent=1 // pred_check
      _
    $region59: #{step_impl.1} parent=1 // pred_check_branch
      %261 = sbr.rel (0) target = $region61
    $region60: #{step_impl.1} parent=1 // pred_region
      %263 = vsyncadd [#allocation4], 0
      %s265 = sshll.u32 [#allocation14], 4
      %s266 = int_to_ptr.vmem [resolvable:$true] %s265
      %s267 = sshll.u32 %s7, 4
      %s268 = int_to_ptr.hbm [resolvable:$true] %s267
      %270 = dma.vmem_to_hbm [thread:$0]  %s266, 128, %s268, [#allocation4]
    $region61: #{step_impl.1} parent=1 // pred_fallthru
      _
    // Predicated region
    $region62: #{step_impl.1} parent=1 // pred_check
      _
    $region63: #{step_impl.1} parent=1 // pred_check_branch
      %272 = sbr.rel (0) target = $region65
    $region64: #{step_impl.1} parent=1 // pred_region
      %274 = vsyncadd [#allocation16], 0
      %s276 = sshll.u32 [#allocation15], 4
      %s277 = int_to_ptr.vmem [resolvable:$true] %s276
      %s278 = sshll.u32 %s8, 4
      %s279 = int_to_ptr.hbm [resolvable:$true] %s278
      %281 = dma.vmem_to_hbm [thread:$0]  %s277, 128, %s279, [#allocation16]
    $region65: #{step_impl.1} parent=1 // pred_fallthru
      _
    // Predicated region
    $region66: #{step_impl.1} parent=1 // pred_check
      _
    $region67: #{step_impl.1} parent=1 // pred_check_branch
      %283 = sbr.rel (0) target = $region69
    $region68: #{step_impl.1} parent=1 // pred_region
      %285 = vsyncadd [#allocation16], 0
      %s287 = sshll.u32 [#allocation17], 4
      %s288 = int_to_ptr.vmem [resolvable:$true] %s287
      %s289 = sshll.u32 %s9, 4
      %s290 = int_to_ptr.hbm [resolvable:$true] %s289
      %292 = dma.vmem_to_hbm [thread:$0]  %s288, 128, %s290, [#allocation16]
    $region69: #{step_impl.1} parent=1 // pred_fallthru
      _
    // Predicated region
    $region70: #{step_impl.1} parent=1 // pred_check
      _
    $region71: #{step_impl.1} parent=1 // pred_check_branch
      %294 = sbr.rel (0) target = $region73
    $region72: #{step_impl.1} parent=1 // pred_region
      %296 = dma.done [#allocation4], 128
    $region73: #{step_impl.1} parent=1 // pred_fallthru
      _
    // Predicated region
    $region74: #{step_impl.1} parent=1 // pred_check
      _
    $region75: #{step_impl.1} parent=1 // pred_check_branch
      %298 = sbr.rel (0) target = $region77
    $region76: #{step_impl.1} parent=1 // pred_region
      %300 = dma.done [#allocation16], 128
    $region77: #{step_impl.1} parent=1 // pred_fallthru
      _
    // Predicated region
    $region78: #{step_impl.1} parent=1 // pred_check
      _
    $region79: #{step_impl.1} parent=1 // pred_check_branch
      %302 = sbr.rel (0) target = $region81
    $region80: #{step_impl.1} parent=1 // pred_region
      %304 = dma.done [#allocation16], 128
    $region81: #{step_impl.1} parent=1 // pred_fallthru
      _
    %305 = vsyncpa [#allocation3], 1
    %306 = vsyncpa [#allocation6], 1
    %307 = vsyncpa [#allocation9], 1
    %308 = vsyncpa [#allocation12], 1
    %309 = vsyncpa [#allocation4], 1
    %310 = vsyncpa [#allocation16], 1

</llo_original>
